<compile_context>
chip_gen: v6e
topology: v6e:2x2x1
jax: 0.10.0
libtpu: 0.0.40
codegen_flags: <defaults>
</compile_context>

<pallas_src>
import functools

import jax
import jax.numpy as jnp
from jax import lax
from jax.experimental import pallas as pl
from jax.experimental.pallas import tpu as pltpu


def _round_up(v, m):
    return (v + m - 1) // m * m


def _rkm_fused_kernel(x_ref, *refs, gammas, num_levels, m_chunk, mxu_dtype):
    """Fused RKM forward for one tile of rows.

    refs = [p_0, alpha_0, b_0, gpp_0, ..., p_{L-1}, alpha_{L-1}, b_{L-1},
            gpp_{L-1}, out]
      p_l     : (M_l, D_l)     f32, pre-scaled by 2*gamma_l on the host
      alpha_l : (M_l, Dout_l)  mxu_dtype (bf16 by default, host-cast)
      b_l     : (1, Dout_l)    f32
      gpp_l   : (1, M_l)       f32 = gamma_l * ||p_l||^2 (unscaled points)
    """
    out_ref = refs[-1]
    level_refs = refs[:-1]

    h = x_ref[...].astype(jnp.float32)                        # (tN, D)
    for l in range(num_levels):
        p_ref, a_ref, b_ref, gpp_ref = level_refs[4 * l: 4 * l + 4]
        g = gammas[l]                                         # static float

        # Row norms do not depend on the support-point chunk: hoist.
        gxx = g * jnp.sum(h * h, axis=-1, keepdims=True)      # (tN, 1)

        m_p = p_ref.shape[0]
        acc = None
        # Static chunking over the support-point axis bounds the live
        # (tN, m) f32 temporaries (xp / expo / k) feeding the EUP exp.
        for m0 in range(0, m_p, m_chunk):
            msz = min(m_chunk, m_p - m0)

            # Distance matmul stays f32: bf16 here poisons the exponent via
            # catastrophic cancellation that exp() then amplifies.
            xp = lax.dot_general(
                h, p_ref[m0:m0 + msz, :],
                dimension_numbers=(((1,), (1,)), ((), ())),
                preferred_element_type=jnp.float32)           # = 2g * x.p

            expo = xp - gxx - gpp_ref[:, m0:m0 + msz]         # -g*||x - p||^2
            expo = jnp.minimum(expo, 0.0)                     # clamp rounding
            k = jnp.exp(expo)                                 # RBF block (tN, m)

            # K @ alpha on the MXU in bf16, f32 accumulation.
            part = lax.dot_general(
                k.astype(mxu_dtype), a_ref[m0:m0 + msz, :],
                dimension_numbers=(((1,), (0,)), ((), ())),
                preferred_element_type=jnp.float32)           # (tN, D_out)
            acc = part if acc is None else acc + part

        h = acc + b_ref[...].astype(jnp.float32)

    out_ref[...] = h.astype(out_ref.dtype)


def rkm_forward(x, levels, *, tile_n=512, mxu_dtype=jnp.bfloat16,
                m_chunk=1024, out_dtype=jnp.float32):
    """RKM.forward: apply every level to x, fused in a single pallas_call.

    levels: list of (P [M, D_in], alpha [M, D_out], b [1, D_out], sigma).
    mxu_dtype applies ONLY to the K @ alpha MXU operands; all element-wise
    math (distance assembly, exp, clamp) stays f32 (v5e VPU/EUP have no bf16).
    Set out_dtype=jnp.bfloat16 to halve the padded HBM writeback for large N.
    """
    n, d_in = x.shape
    num_levels = len(levels)

    # ---- Pad to TPU-friendly shapes (lanes: 128, sublanes: 8). --------------
    # Zero padding is exact: zero feature columns add 0 to ||x - p||^2, zero
    # alpha rows/cols contribute nothing to K @ alpha, zero bias cols stay 0.
    d_in_p = _round_up(d_in, 128)
    n8 = _round_up(max(n, 1), 8)

    flat_params = []
    gammas = []
    cur_d = d_in_p
    max_m_p = 128
    max_d_p = d_in_p
    for (p, alpha, b, sigma) in levels:
        m, dp = p.shape
        d_out = alpha.shape[1]
        m_p = _round_up(m, 128)
        d_out_p = _round_up(d_out, 128)
        max_m_p = max(max_m_p, m_p)
        max_d_p = max(max_d_p, d_out_p)

        gamma = 1.0 / (2.0 * float(sigma) ** 2)

        p_pad = jnp.zeros((m_p, cur_d), jnp.float32).at[:m, :dp].set(
            p.astype(jnp.float32))
        # gamma * ||p||^2 from the *unscaled* points (host precompute).
        gpp = (gamma * jnp.sum(p_pad * p_pad, axis=-1))[None, :]     # (1, m_p)
        # Fold 2*gamma into P so the distance matmul directly yields 2g*x.p.
        p_pad = (2.0 * gamma) * p_pad
        # Host-cast alpha to the MXU dtype: halves DMA/VMEM bytes, removes a
        # per-tile cast in the kernel.
        a_pad = jnp.zeros((m_p, d_out_p), mxu_dtype).at[:m, :d_out].set(
            alpha.astype(mxu_dtype))
        b_pad = jnp.zeros((1, d_out_p), jnp.float32).at[:, :d_out].set(
            b.astype(jnp.float32))

        flat_params += [p_pad, a_pad, b_pad, gpp]
        gammas.append(gamma)
        cur_d = d_out_p

    d_out_final = levels[-1][1].shape[1]
    d_out_final_p = cur_d

    # ---- Row tile: fill the 256-wide MXU, give v7x's 2 TCs >= 2 grid steps. -
    tn = min(tile_n, n8)
    if n8 >= 16 and (n8 + tn - 1) // tn < 2:
        tn = _round_up((n8 + 1) // 2, 8)

    # ---- VMEM budget: query capacity, leave ~25% headroom. ------------------
    try:
        vmem_cap = int(pltpu.get_tpu_info().vmem_capacity_bytes)
    except Exception:
        vmem_cap = 64 << 20                 # conservative (v7x per-TC)
    vmem_budget = int(vmem_cap * 0.75)      # never claim the whole VMEM

    param_bytes = sum(int(a.size) * jnp.dtype(a.dtype).itemsize
                      for a in flat_params)

    def _estimate(tn_):
        chunk = min(m_chunk, max_m_p)
        tiles = 2 * (4 * tn_ * d_in_p
                     + jnp.dtype(out_dtype).itemsize * tn_ * d_out_final_p)
        temps = (4 * tn_ * 3 * chunk        # xp / expo / k live together (f32)
                 + 2 * tn_ * chunk          # bf16 copy of k for the MXU
                 + 4 * tn_ * 2 * max_d_p)   # partial acc + h
        return 2 * param_bytes + tiles + temps   # params are double-buffered

    est = _estimate(tn)
    if est > vmem_budget and tn > 256:
        tn = 256                            # keep >= 256: v6e/v7x MXU is 256 wide
        est = _estimate(tn)
    # TODO(synk): if est still exceeds the budget (very large M), stream the
    # level params from HBM (memory_space=pl.ANY + manual DMA over M blocks)
    # instead of keeping whole P / alpha VMEM-resident.
    vmem_limit_bytes = int(min(max(est + (8 << 20), 32 << 20), vmem_budget))

    n_p = _round_up(n8, tn)
    x_p = jnp.zeros((n_p, d_in_p), jnp.float32).at[:n, :d_in].set(
        x.astype(jnp.float32))
    grid = (n_p // tn,)

    # ---- BlockSpecs: x/out tiled over N, per-level params whole-array. ------
    in_specs = [pl.BlockSpec((tn, d_in_p), lambda i: (i, 0))]
    for a in flat_params:
        in_specs.append(pl.BlockSpec(a.shape, lambda i: (0, 0)))
    out_spec = pl.BlockSpec((tn, d_out_final_p), lambda i: (i, 0))

    kernel = functools.partial(
        _rkm_fused_kernel,
        gammas=tuple(gammas),
        num_levels=num_levels,
        m_chunk=int(m_chunk),
        mxu_dtype=mxu_dtype,
    )

    out_p = pl.pallas_call(
        kernel,
        out_shape=jax.ShapeDtypeStruct((n_p, d_out_final_p), out_dtype),
        grid_spec=pltpu.PrefetchScalarGridSpec(
            num_scalar_prefetch=0,
            grid=grid,
            in_specs=in_specs,
            out_specs=out_spec,
        ),
        compiler_params=pltpu.CompilerParams(
            dimension_semantics=("parallel",),
            vmem_limit_bytes=vmem_limit_bytes,
        ),
    )(x_p, *flat_params)

    return out_p[:n, :d_out_final]


def build_rkm_levels(key, d_in, level_cfg):
    """Deterministically initialize per-level parameters.

    level_cfg: list of (num_support_points M, size_out D_out, sigma).
    """
    levels = []
    cur_dim = d_in
    for (m, d_out, sigma) in level_cfg:
        key, kp, ka, kb = jax.random.split(key, 4)
        p = jax.random.normal(kp, (m, cur_dim), dtype=jnp.float32)
        alpha = 0.1 * jax.random.normal(ka, (m, d_out), dtype=jnp.float32)
        b = 0.01 * jax.random.normal(kb, (1, d_out), dtype=jnp.float32)
        levels.append((p, alpha, b, sigma))
        cur_dim = d_out
    return levels


if __name__ == "__main__":
    key = jax.random.PRNGKey(0)
    key, kx = jax.random.split(key)

    N, D0 = 8, 32                       # batch of 8 samples, 32 input features
    # Two levels: level1 (M=16 support pts, size_out=16), level2 (M=16, size_out=8)
    level_cfg = [(16, 16, 1.5), (16, 8, 2.0)]

    x = jax.random.normal(kx, (N, D0), dtype=jnp.float32)
    levels = build_rkm_levels(key, D0, level_cfg)

    out = rkm_forward(x, levels)        # default mxu_dtype=bf16 for K @ alpha
    out = jax.block_until_ready(out)

    # Pure-JAX f32 reference (same d2 clamp as the kernel).
    ref = x
    for (p, alpha, b, sigma) in levels:
        d2 = (jnp.sum(ref * ref, -1, keepdims=True)
              + jnp.sum(p * p, -1)[None, :]
              - 2.0 * ref @ p.T)
        d2 = jnp.maximum(d2, 0.0)
        ref = jnp.exp(-d2 / (2.0 * sigma ** 2)) @ alpha + b

    assert out.shape == (N, level_cfg[-1][1])
    # Tolerance accounts for the bf16 K @ alpha MXU path (f32 accumulation).
    assert jnp.allclose(out, ref, atol=2e-2, rtol=2e-2), float(
        jnp.max(jnp.abs(out - ref)))
    print("KERNEL_OK")
</pallas_src>

<mosaic_0001>
module attributes {stable_mosaic.version = 11 : i64} {
  func.func @_rkm_fused_kernel(%arg0: i32, %arg1: memref<8x128xf32, #tpu.memory_space<vmem>>, %arg2: memref<128x128xf32, #tpu.memory_space<vmem>>, %arg3: memref<128x128xbf16, #tpu.memory_space<vmem>>, %arg4: memref<1x128xf32, #tpu.memory_space<vmem>>, %arg5: memref<1x128xf32, #tpu.memory_space<vmem>>, %arg6: memref<128x128xf32, #tpu.memory_space<vmem>>, %arg7: memref<128x128xbf16, #tpu.memory_space<vmem>>, %arg8: memref<1x128xf32, #tpu.memory_space<vmem>>, %arg9: memref<1x128xf32, #tpu.memory_space<vmem>>, %arg10: memref<8x128xf32, #tpu.memory_space<vmem>>) attributes {dimension_semantics = [#tpu.dimension_semantics<parallel>], iteration_bounds = array<i64: 1>, scalar_prefetch = 0 : i64, scratch_operands = 0 : i64, tpu.core_type = #tpu.core_type<tc>, window_params = [{transform_indices = @transform_0, window_bounds = array<i64: 8, 128>}, {pipeline_mode = #tpu.pipeline_mode<synchronous>, transform_indices = @transform_1, window_bounds = array<i64: 128, 128>}, {pipeline_mode = #tpu.pipeline_mode<synchronous>, transform_indices = @transform_2, window_bounds = array<i64: 128, 128>}, {pipeline_mode = #tpu.pipeline_mode<synchronous>, transform_indices = @transform_3, window_bounds = array<i64: 1, 128>}, {pipeline_mode = #tpu.pipeline_mode<synchronous>, transform_indices = @transform_4, window_bounds = array<i64: 1, 128>}, {pipeline_mode = #tpu.pipeline_mode<synchronous>, transform_indices = @transform_5, window_bounds = array<i64: 128, 128>}, {pipeline_mode = #tpu.pipeline_mode<synchronous>, transform_indices = @transform_6, window_bounds = array<i64: 128, 128>}, {pipeline_mode = #tpu.pipeline_mode<synchronous>, transform_indices = @transform_7, window_bounds = array<i64: 1, 128>}, {pipeline_mode = #tpu.pipeline_mode<synchronous>, transform_indices = @transform_8, window_bounds = array<i64: 1, 128>}, {transform_indices = @transform_9, window_bounds = array<i64: 8, 128>}]} {
    %c0 = arith.constant 0 : index
    %c0_0 = arith.constant 0 : index
    %0 = vector.load %arg1[%c0, %c0_0] : memref<8x128xf32, #tpu.memory_space<vmem>>, vector<8x128xf32>
    %1 = arith.mulf %0, %0 : vector<8x128xf32>
    %cst = arith.constant dense<0.000000e+00> : vector<8xf32>
    %2 = vector.multi_reduction <add>, %1, %cst [1] : vector<8x128xf32> to vector<8xf32>
    %3 = vector.shape_cast %2 : vector<8xf32> to vector<8x1xf32>
    %cst_1 = arith.constant 0.222222224 : f32
    %4 = vector.broadcast %cst_1 : f32 to vector<8x1xf32>
    %5 = arith.mulf %4, %3 : vector<8x1xf32>
    %c0_2 = arith.constant 0 : index
    %c0_3 = arith.constant 0 : index
    %6 = vector.load %arg2[%c0_2, %c0_3] : memref<128x128xf32, #tpu.memory_space<vmem>>, vector<128x128xf32>
    %cst_4 = arith.constant dense<0.000000e+00> : vector<8x128xf32>
    %7 = tpu.matmul %0, %6, %cst_4 {dimension_numbers = #tpu.dot_dimension_numbers<[1], [1], [0], [0], [0, 0, 1, 0], [], []>} : vector<8x128xf32>, vector<128x128xf32>, vector<8x128xf32> -> vector<8x128xf32>
    %8 = vector.broadcast %5 : vector<8x1xf32> to vector<8x128xf32>
    %9 = arith.subf %7, %8 : vector<8x128xf32>
    %c0_5 = arith.constant 0 : index
    %c0_6 = arith.constant 0 : index
    %10 = vector.load %arg5[%c0_5, %c0_6] : memref<1x128xf32, #tpu.memory_space<vmem>>, vector<1x128xf32>
    %11 = vector.broadcast %10 : vector<1x128xf32> to vector<8x128xf32>
    %12 = arith.subf %9, %11 : vector<8x128xf32>
    %cst_7 = arith.constant 0.000000e+00 : f32
    %13 = vector.broadcast %cst_7 : f32 to vector<8x128xf32>
    %14 = arith.minimumf %12, %13 : vector<8x128xf32>
    %15 = math.exp %14 : vector<8x128xf32>
    %16 = arith.truncf %15 : vector<8x128xf32> to vector<8x128xbf16>
    %c0_8 = arith.constant 0 : index
    %c0_9 = arith.constant 0 : index
    %17 = vector.load %arg3[%c0_8, %c0_9] : memref<128x128xbf16, #tpu.memory_space<vmem>>, vector<128x128xbf16>
    %cst_10 = arith.constant dense<0.000000e+00> : vector<8x128xf32>
    %18 = tpu.matmul %16, %17, %cst_10 {dimension_numbers = #tpu.dot_dimension_numbers<[1], [0], [0], [1], [0, 0, 1, 1], [], []>} : vector<8x128xbf16>, vector<128x128xbf16>, vector<8x128xf32> -> vector<8x128xf32>
    %c0_11 = arith.constant 0 : index
    %c0_12 = arith.constant 0 : index
    %19 = vector.load %arg4[%c0_11, %c0_12] : memref<1x128xf32, #tpu.memory_space<vmem>>, vector<1x128xf32>
    %20 = vector.broadcast %19 : vector<1x128xf32> to vector<8x128xf32>
    %21 = arith.addf %18, %20 : vector<8x128xf32>
    %22 = arith.mulf %21, %21 : vector<8x128xf32>
    %cst_13 = arith.constant dense<0.000000e+00> : vector<8xf32>
    %23 = vector.multi_reduction <add>, %22, %cst_13 [1] : vector<8x128xf32> to vector<8xf32>
    %24 = vector.shape_cast %23 : vector<8xf32> to vector<8x1xf32>
    %cst_14 = arith.constant 1.250000e-01 : f32
    %25 = vector.broadcast %cst_14 : f32 to vector<8x1xf32>
    %26 = arith.mulf %25, %24 : vector<8x1xf32>
    %c0_15 = arith.constant 0 : index
    %c0_16 = arith.constant 0 : index
    %27 = vector.load %arg6[%c0_15, %c0_16] : memref<128x128xf32, #tpu.memory_space<vmem>>, vector<128x128xf32>
    %cst_17 = arith.constant dense<0.000000e+00> : vector<8x128xf32>
    %28 = tpu.matmul %21, %27, %cst_17 {dimension_numbers = #tpu.dot_dimension_numbers<[1], [1], [0], [0], [0, 0, 1, 0], [], []>} : vector<8x128xf32>, vector<128x128xf32>, vector<8x128xf32> -> vector<8x128xf32>
    %29 = vector.broadcast %26 : vector<8x1xf32> to vector<8x128xf32>
    %30 = arith.subf %28, %29 : vector<8x128xf32>
    %c0_18 = arith.constant 0 : index
    %c0_19 = arith.constant 0 : index
    %31 = vector.load %arg9[%c0_18, %c0_19] : memref<1x128xf32, #tpu.memory_space<vmem>>, vector<1x128xf32>
    %32 = vector.broadcast %31 : vector<1x128xf32> to vector<8x128xf32>
    %33 = arith.subf %30, %32 : vector<8x128xf32>
    %cst_20 = arith.constant 0.000000e+00 : f32
    %34 = vector.broadcast %cst_20 : f32 to vector<8x128xf32>
    %35 = arith.minimumf %33, %34 : vector<8x128xf32>
    %36 = math.exp %35 : vector<8x128xf32>
    %37 = arith.truncf %36 : vector<8x128xf32> to vector<8x128xbf16>
    %c0_21 = arith.constant 0 : index
    %c0_22 = arith.constant 0 : index
    %38 = vector.load %arg7[%c0_21, %c0_22] : memref<128x128xbf16, #tpu.memory_space<vmem>>, vector<128x128xbf16>
    %cst_23 = arith.constant dense<0.000000e+00> : vector<8x128xf32>
    %39 = tpu.matmul %37, %38, %cst_23 {dimension_numbers = #tpu.dot_dimension_numbers<[1], [0], [0], [1], [0, 0, 1, 1], [], []>} : vector<8x128xbf16>, vector<128x128xbf16>, vector<8x128xf32> -> vector<8x128xf32>
    %c0_24 = arith.constant 0 : index
    %c0_25 = arith.constant 0 : index
    %40 = vector.load %arg8[%c0_24, %c0_25] : memref<1x128xf32, #tpu.memory_space<vmem>>, vector<1x128xf32>
    %41 = vector.broadcast %40 : vector<1x128xf32> to vector<8x128xf32>
    %42 = arith.addf %39, %41 : vector<8x128xf32>
    %c0_26 = arith.constant 0 : index
    %c0_27 = arith.constant 0 : index
    %43 = vector.load %arg10[%c0_26, %c0_27] : memref<8x128xf32, #tpu.memory_space<vmem>>, vector<8x128xf32>
    tpu.vector_store %arg10[%c0_26, %c0_27], %42 {strides = array<i32>} : memref<8x128xf32, #tpu.memory_space<vmem>>, vector<8x128xf32>,
    return
  }
  func.func @transform_0(%arg0: i32) -> (i32, i32) {
    %c0_i32 = arith.constant 0 : i32
    %c0_i32_0 = arith.constant 0 : i32
    return %arg0, %c0_i32 : i32, i32
  }
  func.func @transform_1(%arg0: i32) -> (i32, i32) {
    %c0_i32 = arith.constant 0 : i32
    %c0_i32_0 = arith.constant 0 : i32
    %c0_i32_1 = arith.constant 0 : i32
    return %c0_i32, %c0_i32_0 : i32, i32
  }
  func.func @transform_2(%arg0: i32) -> (i32, i32) {
    %c0_i32 = arith.constant 0 : i32
    %c0_i32_0 = arith.constant 0 : i32
    %c0_i32_1 = arith.constant 0 : i32
    return %c0_i32, %c0_i32_0 : i32, i32
  }
  func.func @transform_3(%arg0: i32) -> (i32, i32) {
    %c0_i32 = arith.constant 0 : i32
    %c0_i32_0 = arith.constant 0 : i32
    %c0_i32_1 = arith.constant 0 : i32
    return %c0_i32, %c0_i32_0 : i32, i32
  }
  func.func @transform_4(%arg0: i32) -> (i32, i32) {
    %c0_i32 = arith.constant 0 : i32
    %c0_i32_0 = arith.constant 0 : i32
    %c0_i32_1 = arith.constant 0 : i32
    return %c0_i32, %c0_i32_0 : i32, i32
  }
  func.func @transform_5(%arg0: i32) -> (i32, i32) {
    %c0_i32 = arith.constant 0 : i32
    %c0_i32_0 = arith.constant 0 : i32
    %c0_i32_1 = arith.constant 0 : i32
    return %c0_i32, %c0_i32_0 : i32, i32
  }
  func.func @transform_6(%arg0: i32) -> (i32, i32) {
    %c0_i32 = arith.constant 0 : i32
    %c0_i32_0 = arith.constant 0 : i32
    %c0_i32_1 = arith.constant 0 : i32
    return %c0_i32, %c0_i32_0 : i32, i32
  }
  func.func @transform_7(%arg0: i32) -> (i32, i32) {
    %c0_i32 = arith.constant 0 : i32
    %c0_i32_0 = arith.constant 0 : i32
    %c0_i32_1 = arith.constant 0 : i32
    return %c0_i32, %c0_i32_0 : i32, i32
  }
  func.func @transform_8(%arg0: i32) -> (i32, i32) {
    %c0_i32 = arith.constant 0 : i32
    %c0_i32_0 = arith.constant 0 : i32
    %c0_i32_1 = arith.constant 0 : i32
    return %c0_i32, %c0_i32_0 : i32, i32
  }
  func.func @transform_9(%arg0: i32) -> (i32, i32) {
    %c0_i32 = arith.constant 0 : i32
    %c0_i32_0 = arith.constant 0 : i32
    return %arg0, %c0_i32 : i32, i32
  }
}

</mosaic_0001>

<llo_original>
// kernel: tpu_custom_call.1
$region0: #{tpu_custom_call.1}
  #allocation0 [shape = 'u32[]', space=smem, size = 0x4, offset = 0x4, fixed_abs, tag = 'smem constant byte address 0x4 - core index']
  #allocation1 [shape = 'u32[144,128]{1,0:T(1,128)}', space=vmem, size = 0x12000, scoped, tag = 'internal scratch']
  %s0 = inlined_call_operand.hbm [shape: f32[8,128], index: 0, kind: input, shape index: {}]
  %s1 = inlined_call_operand.hbm [shape: f32[128,128], index: 1, kind: input, shape index: {}]
  %s2 = inlined_call_operand.hbm [shape: bf16[128,128], index: 2, kind: input, shape index: {}]
  %s3 = inlined_call_operand.vmem [shape: f32[1,128], index: 3, kind: input, shape index: {}]
  %s4 = inlined_call_operand.vmem [shape: f32[1,128], index: 4, kind: input, shape index: {}]
  %s5 = inlined_call_operand.hbm [shape: f32[128,128], index: 5, kind: input, shape index: {}]
  %s6 = inlined_call_operand.hbm [shape: bf16[128,128], index: 6, kind: input, shape index: {}]
  %s7 = inlined_call_operand.vmem [shape: f32[1,128], index: 7, kind: input, shape index: {}]
  %s8 = inlined_call_operand.vmem [shape: f32[1,128], index: 8, kind: input, shape index: {}]
  %s9 = inlined_call_operand.hbm [shape: f32[8,128], index: 9, kind: output, shape index: {}]
  %s10 = sld [smem:[#allocation0]]
  $region66: #{tpu_custom_call.1} parent=0
    _
  %s12 = ssub.s32 1, %s10
  %s13 = scalar_select 0, %s12, %s10
  $region1: #{tpu_custom_call.1} parent=0
    #allocation2 [shape = 'u8[4096]{0}', space=vmem, size = 0x1000, scoped, tag = 'input window, operand 0, single buffered']
    #allocation3 [shape = 's32[1]{0}', space=sflag, size = 0x4, scoped, tag = 'scoped memory for tpu_custom_call.1']
    #allocation4 [shape = 's32[1]{0}', space=sflag, size = 0x4, scoped, tag = 'scoped memory for tpu_custom_call.1']
    #allocation5 [shape = 'u8[65536]{0}', space=vmem, size = 0x10000, scoped, tag = 'input window, operand 1, single buffered']
    #allocation6 [shape = 's32[1]{0}', space=sflag, size = 0x4, scoped, tag = 'scoped memory for tpu_custom_call.1']
    #allocation7 [shape = 'u8[32768]{0}', space=vmem, size = 0x8000, scoped, tag = 'input window, operand 2, single buffered']
    #allocation8 [shape = 'u8[65536]{0}', space=vmem, size = 0x10000, scoped, tag = 'input window, operand 5, single buffered']
    #allocation9 [shape = 's32[1]{0}', space=sflag, size = 0x4, scoped, tag = 'scoped memory for tpu_custom_call.1']
    #allocation10 [shape = 'u8[32768]{0}', space=vmem, size = 0x8000, scoped, tag = 'input window, operand 6, single buffered']
    #allocation11 [shape = 'u8[4096]{0}', space=vmem, size = 0x1000, scoped, tag = 'output window, operand 0, single buffered']
    %14 = vsyncpa [#allocation3], 0
    %15 = vsyncpa [#allocation6], 0
    %16 = vsyncpa [#allocation9], 0
    %17 = vsyncpa [#allocation4], 0
    // Predicated region
    $region2: #{tpu_custom_call.1} parent=1 // pred_check
      _
    $region3: #{tpu_custom_call.1} parent=1 // pred_check_branch
      %19 = sbr.rel (0) target = $region5
    $region4: #{tpu_custom_call.1} parent=1 // pred_region
      %s21 = ssub.s32 128, 128
      %22 = vsyncadd [#allocation3], %s21
      %s24 = sshll.u32 [#allocation2], 4
      %s25 = int_to_ptr.vmem [resolvable:$true] %s24
      %27 = dma.hbm_to_vmem [thread:$0]  %s0, 128, %s25, [#allocation3]
    $region5: #{tpu_custom_call.1} parent=1 // pred_fallthru
      _
    // Predicated region
    $region6: #{tpu_custom_call.1} parent=1 // pred_check
      _
    $region7: #{tpu_custom_call.1} parent=1 // pred_check_branch
      %29 = sbr.rel (0) target = $region9
    $region8: #{tpu_custom_call.1} parent=1 // pred_region
      %s31 = ssub.s32 2048, 2048
      %32 = vsyncadd [#allocation6], %s31
      %s33 = sshll.u32 [#allocation5], 4
      %s34 = int_to_ptr.vmem [resolvable:$true] %s33
      %39 = dma.hbm_to_vmem [thread:$0]  %s1, 2048, %s34, [#allocation6], 128, 128, 8
    $region9: #{tpu_custom_call.1} parent=1 // pred_fallthru
      _
    // Predicated region
    $region10: #{tpu_custom_call.1} parent=1 // pred_check
      _
    $region11: #{tpu_custom_call.1} parent=1 // pred_check_branch
      %41 = sbr.rel (0) target = $region13
    $region12: #{tpu_custom_call.1} parent=1 // pred_region
      %s43 = ssub.s32 1024, 1024
      %44 = vsyncadd [#allocation6], %s43
      %s45 = sshll.u32 [#allocation7], 4
      %s46 = int_to_ptr.vmem [resolvable:$true] %s45
      %51 = dma.hbm_to_vmem [thread:$0]  %s2, 1024, %s46, [#allocation6], 64, 64, 4
    $region13: #{tpu_custom_call.1} parent=1 // pred_fallthru
      _
    // Predicated region
    $region14: #{tpu_custom_call.1} parent=1 // pred_check
      _
    $region15: #{tpu_custom_call.1} parent=1 // pred_check_branch
      %53 = sbr.rel (0) target = $region17
    $region16: #{tpu_custom_call.1} parent=1 // pred_region
      _
    $region17: #{tpu_custom_call.1} parent=1 // pred_fallthru
      _
    // Predicated region
    $region18: #{tpu_custom_call.1} parent=1 // pred_check
      _
    $region19: #{tpu_custom_call.1} parent=1 // pred_check_branch
      %55 = sbr.rel (0) target = $region21
    $region20: #{tpu_custom_call.1} parent=1 // pred_region
      _
    $region21: #{tpu_custom_call.1} parent=1 // pred_fallthru
      _
    // Predicated region
    $region22: #{tpu_custom_call.1} parent=1 // pred_check
      _
    $region23: #{tpu_custom_call.1} parent=1 // pred_check_branch
      %57 = sbr.rel (0) target = $region25
    $region24: #{tpu_custom_call.1} parent=1 // pred_region
      %s59 = ssub.s32 2048, 2048
      %60 = vsyncadd [#allocation9], %s59
      %s61 = sshll.u32 [#allocation8], 4
      %s62 = int_to_ptr.vmem [resolvable:$true] %s61
      %67 = dma.hbm_to_vmem [thread:$0]  %s5, 2048, %s62, [#allocation9], 128, 128, 8
    $region25: #{tpu_custom_call.1} parent=1 // pred_fallthru
      _
    // Predicated region
    $region26: #{tpu_custom_call.1} parent=1 // pred_check
      _
    $region27: #{tpu_custom_call.1} parent=1 // pred_check_branch
      %69 = sbr.rel (0) target = $region29
    $region28: #{tpu_custom_call.1} parent=1 // pred_region
      %s71 = ssub.s32 1024, 1024
      %72 = vsyncadd [#allocation9], %s71
      %s73 = sshll.u32 [#allocation10], 4
      %s74 = int_to_ptr.vmem [resolvable:$true] %s73
      %79 = dma.hbm_to_vmem [thread:$0]  %s6, 1024, %s74, [#allocation9], 64, 64, 4
    $region29: #{tpu_custom_call.1} parent=1 // pred_fallthru
      _
    // Predicated region
    $region30: #{tpu_custom_call.1} parent=1 // pred_check
      _
    $region31: #{tpu_custom_call.1} parent=1 // pred_check_branch
      %81 = sbr.rel (0) target = $region33
    $region32: #{tpu_custom_call.1} parent=1 // pred_region
      _
    $region33: #{tpu_custom_call.1} parent=1 // pred_fallthru
      _
    // Predicated region
    $region34: #{tpu_custom_call.1} parent=1 // pred_check
      _
    $region35: #{tpu_custom_call.1} parent=1 // pred_check_branch
      %83 = sbr.rel (0) target = $region37
    $region36: #{tpu_custom_call.1} parent=1 // pred_region
      _
    $region37: #{tpu_custom_call.1} parent=1 // pred_fallthru
      _
    // Predicated region
    $region38: #{tpu_custom_call.1} parent=1 // pred_check
      _
    $region39: #{tpu_custom_call.1} parent=1 // pred_check_branch
      %85 = sbr.rel (0) target = $region41
    $region40: #{tpu_custom_call.1} parent=1 // pred_region
      %86 = dma.done [#allocation3], 128
    $region41: #{tpu_custom_call.1} parent=1 // pred_fallthru
      _
    // Predicated region
    $region42: #{tpu_custom_call.1} parent=1 // pred_check
      _
    $region43: #{tpu_custom_call.1} parent=1 // pred_check_branch
      %88 = sbr.rel (0) target = $region45
    $region44: #{tpu_custom_call.1} parent=1 // pred_region
      %89 = dma.done [#allocation6], 2048
    $region45: #{tpu_custom_call.1} parent=1 // pred_fallthru
      _
    // Predicated region
    $region46: #{tpu_custom_call.1} parent=1 // pred_check
      _
    $region47: #{tpu_custom_call.1} parent=1 // pred_check_branch
      %91 = sbr.rel (0) target = $region49
    $region48: #{tpu_custom_call.1} parent=1 // pred_region
      %92 = dma.done [#allocation6], 1024
    $region49: #{tpu_custom_call.1} parent=1 // pred_fallthru
      _
    // Predicated region
    $region50: #{tpu_custom_call.1} parent=1 // pred_check
      _
    $region51: #{tpu_custom_call.1} parent=1 // pred_check_branch
      %94 = sbr.rel (0) target = $region53
    $region52: #{tpu_custom_call.1} parent=1 // pred_region
      %95 = dma.done [#allocation9], 2048
    $region53: #{tpu_custom_call.1} parent=1 // pred_fallthru
      _
    // Predicated region
    $region54: #{tpu_custom_call.1} parent=1 // pred_check
      _
    $region55: #{tpu_custom_call.1} parent=1 // pred_check_branch
      %97 = sbr.rel (0) target = $region57
    $region56: #{tpu_custom_call.1} parent=1 // pred_region
      %98 = dma.done [#allocation9], 1024
    $region57: #{tpu_custom_call.1} parent=1 // pred_fallthru
      _
    %v100 = vld [vmem:[#allocation2] sm:$0xff]
    %v101 = vmul.f32 %v100, %v100
    %102 = vadd.xlane.f32.xlu0 %v101
    %v103 = vpop.xlane.xlu0 %102
    %v104 = vmul.f32 %v103, 0.22222222
    %v105 = vld [vmem:[#allocation5] sm:$0xff]
    %v106 = vld [vmem:[#allocation5 + $0x8] sm:$0xff]
    %v107 = vld [vmem:[#allocation5 + $0x10] sm:$0xff]
    %v108 = vld [vmem:[#allocation5 + $0x18] sm:$0xff]
    %v109 = vld [vmem:[#allocation5 + $0x20] sm:$0xff]
    %v110 = vld [vmem:[#allocation5 + $0x28] sm:$0xff]
    %v111 = vld [vmem:[#allocation5 + $0x30] sm:$0xff]
    %v112 = vld [vmem:[#allocation5 + $0x38] sm:$0xff]
    %v113 = vld [vmem:[#allocation5 + $0x40] sm:$0xff]
    %v114 = vld [vmem:[#allocation5 + $0x48] sm:$0xff]
    %v115 = vld [vmem:[#allocation5 + $0x50] sm:$0xff]
    %v116 = vld [vmem:[#allocation5 + $0x58] sm:$0xff]
    %v117 = vld [vmem:[#allocation5 + $0x60] sm:$0xff]
    %v118 = vld [vmem:[#allocation5 + $0x68] sm:$0xff]
    %v119 = vld [vmem:[#allocation5 + $0x70] sm:$0xff]
    %v120 = vld [vmem:[#allocation5 + $0x78] sm:$0xff]
    %121 = vmatprep.subr.mxu0 0.0
    %122 = vmatpush1.xpose.msra.mxu0 %v120
    %123 = vmatprep.subr.mxu0 0.0
    %124 = vmatpush1.xpose.msra.mxu0 %v119
    %125 = vmatprep.subr.mxu0 0.0
    %126 = vmatpush1.xpose.msra.mxu0 %v118
    %127 = vmatprep.subr.mxu0 0.0
    %128 = vmatpush1.xpose.msra.mxu0 %v117
    %129 = vmatprep.subr.mxu0 0.0
    %130 = vmatpush1.xpose.msra.mxu0 %v116
    %131 = vmatprep.subr.mxu0 0.0
    %132 = vmatpush1.xpose.msra.mxu0 %v115
    %133 = vmatprep.subr.mxu0 0.0
    %134 = vmatpush1.xpose.msra.mxu0 %v114
    %135 = vmatprep.subr.mxu0 0.0
    %136 = vmatpush1.xpose.msra.mxu0 %v113
    %137 = vmatprep.subr.mxu0 0.0
    %138 = vmatpush1.xpose.msra.mxu0 %v112
    %139 = vmatprep.subr.mxu0 0.0
    %140 = vmatpush1.xpose.msra.mxu0 %v111
    %141 = vmatprep.subr.mxu0 0.0
    %142 = vmatpush1.xpose.msra.mxu0 %v110
    %143 = vmatprep.subr.mxu0 0.0
    %144 = vmatpush1.xpose.msra.mxu0 %v109
    %145 = vmatprep.subr.mxu0 0.0
    %146 = vmatpush1.xpose.msra.mxu0 %v108
    %147 = vmatprep.subr.mxu0 0.0
    %148 = vmatpush1.xpose.msra.mxu0 %v107
    %149 = vmatprep.subr.mxu0 0.0
    %150 = vmatpush1.xpose.msra.mxu0 %v106
    %151 = vmatprep.subr.mxu0 0.0
    %152 = vmatpush1.xpose.msra.mxu0 %v105
    %153 = vmatprep.subr.mxu0 0.0
    %154 = vmatpush2.xpose.msra.mxu0 0.0
    %155 = vmatprep.subr.mxu0 0.0
    %156 = vmatpush2.xpose.msra.mxu0 0.0
    %157 = vmatprep.subr.mxu0 0.0
    %158 = vmatpush2.xpose.msra.mxu0 0.0
    %159 = vmatprep.subr.mxu0 0.0
    %160 = vmatpush2.xpose.msra.mxu0 0.0
    %161 = vmatprep.subr.mxu0 0.0
    %162 = vmatpush2.xpose.msra.mxu0 0.0
    %163 = vmatprep.subr.mxu0 0.0
    %164 = vmatpush2.xpose.msra.mxu0 0.0
    %165 = vmatprep.subr.mxu0 0.0
    %166 = vmatpush2.xpose.msra.mxu0 0.0
    %167 = vmatprep.subr.mxu0 0.0
    %168 = vmatpush2.xpose.msra.mxu0 0.0
    %169 = vmatprep.subr.mxu0 0.0
    %170 = vmatpush2.xpose.msra.mxu0 0.0
    %171 = vmatprep.subr.mxu0 0.0
    %172 = vmatpush2.xpose.msra.mxu0 0.0
    %173 = vmatprep.subr.mxu0 0.0
    %174 = vmatpush2.xpose.msra.mxu0 0.0
    %175 = vmatprep.subr.mxu0 0.0
    %176 = vmatpush2.xpose.msra.mxu0 0.0
    %177 = vmatprep.subr.mxu0 0.0
    %178 = vmatpush2.xpose.msra.mxu0 0.0
    %179 = vmatprep.subr.mxu0 0.0
    %180 = vmatpush2.xpose.msra.mxu0 0.0
    %181 = vmatprep.subr.mxu0 0.0
    %182 = vmatpush2.xpose.msra.mxu0 0.0
    %183 = vmatprep.subr.mxu0 0.0
    %184 = vmatpush2.xpose.msra.mxu0 0.0
    %185 = vmatprep.mubr.f32.mxu0 0.0
    %186 = vmatmul.mubr.f32.gmra.mxu0 %v100
    %v187 = vpop.f32.mrf.mxu0
    %v188 = vadd.f32 0.0, %v187
    %v189 = vpop.f32.mrf.mxu0
    %190 = vdwg.mxu0
    %v191 = vsub.f32 %v188, %v104
    %v192 = vld [vmem:[%s4] sm:$0x1]
    %v194 = vlaneseq
    %v195 = vshrl.u32 %v194, 7
    %v196 = vsub.s32 0, %v195
    %v197 = vrot.slane %v192, %v196
    %v199 = vsub.f32 %v191, %v197
    %v200 = vmin.f32 %v199, 0.0
    %v201 = vmul.f32 %v200, 1.442695
    %v202 = vpow.pop %v201
    %v203 = vpack.c.bf16 %v202, %v202
    %v204 = vld [vmem:[#allocation7] sm:$0xf]
    %v205 = vld [vmem:[#allocation7 + $0x4] sm:$0xf]
    %v206 = vld [vmem:[#allocation7 + $0x8] sm:$0xf]
    %v207 = vld [vmem:[#allocation7 + $0xc] sm:$0xf]
    %v208 = vld [vmem:[#allocation7 + $0x10] sm:$0xf]
    %v209 = vld [vmem:[#allocation7 + $0x14] sm:$0xf]
    %v210 = vld [vmem:[#allocation7 + $0x18] sm:$0xf]
    %v211 = vld [vmem:[#allocation7 + $0x1c] sm:$0xf]
    %v212 = vld [vmem:[#allocation7 + $0x20] sm:$0xf]
    %v213 = vld [vmem:[#allocation7 + $0x24] sm:$0xf]
    %v214 = vld [vmem:[#allocation7 + $0x28] sm:$0xf]
    %v215 = vld [vmem:[#allocation7 + $0x2c] sm:$0xf]
    %v216 = vld [vmem:[#allocation7 + $0x30] sm:$0xf]
    %v217 = vld [vmem:[#allocation7 + $0x34] sm:$0xf]
    %v218 = vld [vmem:[#allocation7 + $0x38] sm:$0xf]
    %v219 = vld [vmem:[#allocation7 + $0x3c] sm:$0xf]
    %v220 = vld [vmem:[%s3] sm:$0x1]
    %v222 = vlaneseq
    %v223 = vshrl.u32 %v222, 7
    %v224 = vsub.s32 0, %v223
    %v225 = vrot.slane %v220, %v224
    %v243 = vunpack.c.l.b16 %v204
    %v244 = vunpack.c.l.b16 %v205
    %v245 = vunpack.c.l.b16 %v206
    %v246 = vunpack.c.l.b16 %v207
    %v247 = vunpack.c.l.b16 %v208
    %v248 = vunpack.c.l.b16 %v209
    %v249 = vunpack.c.l.b16 %v210
    %v250 = vunpack.c.l.b16 %v211
    %v251 = vunpack.c.l.b16 %v212
    %v252 = vunpack.c.l.b16 %v213
    %v253 = vunpack.c.l.b16 %v214
    %v254 = vunpack.c.l.b16 %v215
    %v255 = vunpack.c.l.b16 %v216
    %v256 = vunpack.c.l.b16 %v217
    %v257 = vunpack.c.l.b16 %v218
    %v258 = vunpack.c.l.b16 %v219
    %v259 = vpack.c.b16 %v244, %v243
    %v260 = vpack.c.b16 %v246, %v245
    %v261 = vpack.c.b16 %v248, %v247
    %v262 = vpack.c.b16 %v250, %v249
    %v263 = vpack.c.b16 %v252, %v251
    %v264 = vpack.c.b16 %v254, %v253
    %v265 = vpack.c.b16 %v256, %v255
    %v266 = vpack.c.b16 %v258, %v257
    %275 = vmatprep.subr.bf16.mxu0 0
    %276 = vmatpush1.bf16.msra.mxu0 %v266
    %277 = vmatprep.subr.bf16.mxu0 0
    %278 = vmatpush1.bf16.msra.mxu0 %v265
    %279 = vmatprep.subr.bf16.mxu0 0
    %280 = vmatpush1.bf16.msra.mxu0 %v264
    %281 = vmatprep.subr.bf16.mxu0 0
    %282 = vmatpush1.bf16.msra.mxu0 %v263
    %283 = vmatprep.subr.bf16.mxu0 0
    %284 = vmatpush1.bf16.msra.mxu0 %v262
    %285 = vmatprep.subr.bf16.mxu0 0
    %286 = vmatpush1.bf16.msra.mxu0 %v261
    %287 = vmatprep.subr.bf16.mxu0 0
    %288 = vmatpush1.bf16.msra.mxu0 %v260
    %289 = vmatprep.subr.bf16.mxu0 0
    %290 = vmatpush1.bf16.msra.mxu0 %v259
    %291 = vmatprep.subr.bf16.mxu0 0
    %292 = vmatpush2.bf16.msra.mxu0 0
    %293 = vmatprep.subr.bf16.mxu0 0
    %294 = vmatpush2.bf16.msra.mxu0 0
    %295 = vmatprep.subr.bf16.mxu0 0
    %296 = vmatpush2.bf16.msra.mxu0 0
    %297 = vmatprep.subr.bf16.mxu0 0
    %298 = vmatpush2.bf16.msra.mxu0 0
    %299 = vmatprep.subr.bf16.mxu0 0
    %300 = vmatpush2.bf16.msra.mxu0 0
    %301 = vmatprep.subr.bf16.mxu0 0
    %302 = vmatpush2.bf16.msra.mxu0 0
    %303 = vmatprep.subr.bf16.mxu0 0
    %304 = vmatpush2.bf16.msra.mxu0 0
    %305 = vmatprep.subr.bf16.mxu0 0
    %306 = vmatpush2.bf16.msra.mxu0 0
    %307 = vmatprep.mubr.bf16.mxu0 0
    %308 = vmatmul.mubr.bf16.gmra.mxu0 %v203
    %v309 = vpop.f32.mrf.mxu0
    %v310 = vadd.f32 %v225, %v309
    %v311 = vpop.f32.mrf.mxu0
    %v312 = vpop.f32.mrf.mxu0
    %v313 = vpop.f32.mrf.mxu0
    %314 = vdwg.mxu0
    %v315 = vmul.f32 %v310, %v310
    %316 = vadd.xlane.f32.xlu0 %v315
    %v317 = vpop.xlane.xlu0 %316
    %v318 = vmul.f32 %v317, 0.125
    %v319 = vld [vmem:[#allocation8] sm:$0xff]
    %v320 = vld [vmem:[#allocation8 + $0x8] sm:$0xff]
    %v321 = vld [vmem:[#allocation8 + $0x10] sm:$0xff]
    %v322 = vld [vmem:[#allocation8 + $0x18] sm:$0xff]
    %v323 = vld [vmem:[#allocation8 + $0x20] sm:$0xff]
    %v324 = vld [vmem:[#allocation8 + $0x28] sm:$0xff]
    %v325 = vld [vmem:[#allocation8 + $0x30] sm:$0xff]
    %v326 = vld [vmem:[#allocation8 + $0x38] sm:$0xff]
    %v327 = vld [vmem:[#allocation8 + $0x40] sm:$0xff]
    %v328 = vld [vmem:[#allocation8 + $0x48] sm:$0xff]
    %v329 = vld [vmem:[#allocation8 + $0x50] sm:$0xff]
    %v330 = vld [vmem:[#allocation8 + $0x58] sm:$0xff]
    %v331 = vld [vmem:[#allocation8 + $0x60] sm:$0xff]
    %v332 = vld [vmem:[#allocation8 + $0x68] sm:$0xff]
    %v333 = vld [vmem:[#allocation8 + $0x70] sm:$0xff]
    %v334 = vld [vmem:[#allocation8 + $0x78] sm:$0xff]
    %335 = vmatprep.subr.mxu0 0.0
    %336 = vmatpush1.xpose.msra.mxu0 %v334
    %337 = vmatprep.subr.mxu0 0.0
    %338 = vmatpush1.xpose.msra.mxu0 %v333
    %339 = vmatprep.subr.mxu0 0.0
    %340 = vmatpush1.xpose.msra.mxu0 %v332
    %341 = vmatprep.subr.mxu0 0.0
    %342 = vmatpush1.xpose.msra.mxu0 %v331
    %343 = vmatprep.subr.mxu0 0.0
    %344 = vmatpush1.xpose.msra.mxu0 %v330
    %345 = vmatprep.subr.mxu0 0.0
    %346 = vmatpush1.xpose.msra.mxu0 %v329
    %347 = vmatprep.subr.mxu0 0.0
    %348 = vmatpush1.xpose.msra.mxu0 %v328
    %349 = vmatprep.subr.mxu0 0.0
    %350 = vmatpush1.xpose.msra.mxu0 %v327
    %351 = vmatprep.subr.mxu0 0.0
    %352 = vmatpush1.xpose.msra.mxu0 %v326
    %353 = vmatprep.subr.mxu0 0.0
    %354 = vmatpush1.xpose.msra.mxu0 %v325
    %355 = vmatprep.subr.mxu0 0.0
    %356 = vmatpush1.xpose.msra.mxu0 %v324
    %357 = vmatprep.subr.mxu0 0.0
    %358 = vmatpush1.xpose.msra.mxu0 %v323
    %359 = vmatprep.subr.mxu0 0.0
    %360 = vmatpush1.xpose.msra.mxu0 %v322
    %361 = vmatprep.subr.mxu0 0.0
    %362 = vmatpush1.xpose.msra.mxu0 %v321
    %363 = vmatprep.subr.mxu0 0.0
    %364 = vmatpush1.xpose.msra.mxu0 %v320
    %365 = vmatprep.subr.mxu0 0.0
    %366 = vmatpush1.xpose.msra.mxu0 %v319
    %367 = vmatprep.subr.mxu0 0.0
    %368 = vmatpush2.xpose.msra.mxu0 0.0
    %369 = vmatprep.subr.mxu0 0.0
    %370 = vmatpush2.xpose.msra.mxu0 0.0
    %371 = vmatprep.subr.mxu0 0.0
    %372 = vmatpush2.xpose.msra.mxu0 0.0
    %373 = vmatprep.subr.mxu0 0.0
    %374 = vmatpush2.xpose.msra.mxu0 0.0
    %375 = vmatprep.subr.mxu0 0.0
    %376 = vmatpush2.xpose.msra.mxu0 0.0
    %377 = vmatprep.subr.mxu0 0.0
    %378 = vmatpush2.xpose.msra.mxu0 0.0
    %379 = vmatprep.subr.mxu0 0.0
    %380 = vmatpush2.xpose.msra.mxu0 0.0
    %381 = vmatprep.subr.mxu0 0.0
    %382 = vmatpush2.xpose.msra.mxu0 0.0
    %383 = vmatprep.subr.mxu0 0.0
    %384 = vmatpush2.xpose.msra.mxu0 0.0
    %385 = vmatprep.subr.mxu0 0.0
    %386 = vmatpush2.xpose.msra.mxu0 0.0
    %387 = vmatprep.subr.mxu0 0.0
    %388 = vmatpush2.xpose.msra.mxu0 0.0
    %389 = vmatprep.subr.mxu0 0.0
    %390 = vmatpush2.xpose.msra.mxu0 0.0
    %391 = vmatprep.subr.mxu0 0.0
    %392 = vmatpush2.xpose.msra.mxu0 0.0
    %393 = vmatprep.subr.mxu0 0.0
    %394 = vmatpush2.xpose.msra.mxu0 0.0
    %395 = vmatprep.subr.mxu0 0.0
    %396 = vmatpush2.xpose.msra.mxu0 0.0
    %397 = vmatprep.subr.mxu0 0.0
    %398 = vmatpush2.xpose.msra.mxu0 0.0
    %399 = vmatprep.mubr.f32.mxu0 0.0
    %400 = vmatmul.mubr.f32.gmra.mxu0 %v310
    %v401 = vpop.f32.mrf.mxu0
    %v402 = vadd.f32 0.0, %v401
    %v403 = vpop.f32.mrf.mxu0
    %404 = vdwg.mxu0
    %v405 = vsub.f32 %v402, %v318
    %v406 = vld [vmem:[%s8] sm:$0x1]
    %v408 = vlaneseq
    %v409 = vshrl.u32 %v408, 7
    %v410 = vsub.s32 0, %v409
    %v411 = vrot.slane %v406, %v410
    %v413 = vsub.f32 %v405, %v411
    %v414 = vmin.f32 %v413, 0.0
    %v415 = vmul.f32 %v414, 1.442695
    %v416 = vpow.pop %v415
    %v417 = vpack.c.bf16 %v416, %v416
    %v418 = vld [vmem:[#allocation10] sm:$0xf]
    %v419 = vld [vmem:[#allocation10 + $0x4] sm:$0xf]
    %v420 = vld [vmem:[#allocation10 + $0x8] sm:$0xf]
    %v421 = vld [vmem:[#allocation10 + $0xc] sm:$0xf]
    %v422 = vld [vmem:[#allocation10 + $0x10] sm:$0xf]
    %v423 = vld [vmem:[#allocation10 + $0x14] sm:$0xf]
    %v424 = vld [vmem:[#allocation10 + $0x18] sm:$0xf]
    %v425 = vld [vmem:[#allocation10 + $0x1c] sm:$0xf]
    %v426 = vld [vmem:[#allocation10 + $0x20] sm:$0xf]
    %v427 = vld [vmem:[#allocation10 + $0x24] sm:$0xf]
    %v428 = vld [vmem:[#allocation10 + $0x28] sm:$0xf]
    %v429 = vld [vmem:[#allocation10 + $0x2c] sm:$0xf]
    %v430 = vld [vmem:[#allocation10 + $0x30] sm:$0xf]
    %v431 = vld [vmem:[#allocation10 + $0x34] sm:$0xf]
    %v432 = vld [vmem:[#allocation10 + $0x38] sm:$0xf]
    %v433 = vld [vmem:[#allocation10 + $0x3c] sm:$0xf]
    %v434 = vld [vmem:[%s7] sm:$0x1]
    %v436 = vlaneseq
    %v437 = vshrl.u32 %v436, 7
    %v438 = vsub.s32 0, %v437
    %v439 = vrot.slane %v434, %v438
    %v457 = vunpack.c.l.b16 %v418
    %v458 = vunpack.c.l.b16 %v419
    %v459 = vunpack.c.l.b16 %v420
    %v460 = vunpack.c.l.b16 %v421
    %v461 = vunpack.c.l.b16 %v422
    %v462 = vunpack.c.l.b16 %v423
    %v463 = vunpack.c.l.b16 %v424
    %v464 = vunpack.c.l.b16 %v425
    %v465 = vunpack.c.l.b16 %v426
    %v466 = vunpack.c.l.b16 %v427
    %v467 = vunpack.c.l.b16 %v428
    %v468 = vunpack.c.l.b16 %v429
    %v469 = vunpack.c.l.b16 %v430
    %v470 = vunpack.c.l.b16 %v431
    %v471 = vunpack.c.l.b16 %v432
    %v472 = vunpack.c.l.b16 %v433
    %v473 = vpack.c.b16 %v458, %v457
    %v474 = vpack.c.b16 %v460, %v459
    %v475 = vpack.c.b16 %v462, %v461
    %v476 = vpack.c.b16 %v464, %v463
    %v477 = vpack.c.b16 %v466, %v465
    %v478 = vpack.c.b16 %v468, %v467
    %v479 = vpack.c.b16 %v470, %v469
    %v480 = vpack.c.b16 %v472, %v471
    %489 = vmatprep.subr.bf16.mxu0 0
    %490 = vmatpush1.bf16.msra.mxu0 %v480
    %491 = vmatprep.subr.bf16.mxu0 0
    %492 = vmatpush1.bf16.msra.mxu0 %v479
    %493 = vmatprep.subr.bf16.mxu0 0
    %494 = vmatpush1.bf16.msra.mxu0 %v478
    %495 = vmatprep.subr.bf16.mxu0 0
    %496 = vmatpush1.bf16.msra.mxu0 %v477
    %497 = vmatprep.subr.bf16.mxu0 0
    %498 = vmatpush1.bf16.msra.mxu0 %v476
    %499 = vmatprep.subr.bf16.mxu0 0
    %500 = vmatpush1.bf16.msra.mxu0 %v475
    %501 = vmatprep.subr.bf16.mxu0 0
    %502 = vmatpush1.bf16.msra.mxu0 %v474
    %503 = vmatprep.subr.bf16.mxu0 0
    %504 = vmatpush1.bf16.msra.mxu0 %v473
    %505 = vmatprep.subr.bf16.mxu0 0
    %506 = vmatpush2.bf16.msra.mxu0 0
    %507 = vmatprep.subr.bf16.mxu0 0
    %508 = vmatpush2.bf16.msra.mxu0 0
    %509 = vmatprep.subr.bf16.mxu0 0
    %510 = vmatpush2.bf16.msra.mxu0 0
    %511 = vmatprep.subr.bf16.mxu0 0
    %512 = vmatpush2.bf16.msra.mxu0 0
    %513 = vmatprep.subr.bf16.mxu0 0
    %514 = vmatpush2.bf16.msra.mxu0 0
    %515 = vmatprep.subr.bf16.mxu0 0
    %516 = vmatpush2.bf16.msra.mxu0 0
    %517 = vmatprep.subr.bf16.mxu0 0
    %518 = vmatpush2.bf16.msra.mxu0 0
    %519 = vmatprep.subr.bf16.mxu0 0
    %520 = vmatpush2.bf16.msra.mxu0 0
    %521 = vmatprep.mubr.bf16.mxu0 0
    %522 = vmatmul.mubr.bf16.gmra.mxu0 %v417
    %v523 = vpop.f32.mrf.mxu0
    %v524 = vadd.f32 %v439, %v523
    %v525 = vpop.f32.mrf.mxu0
    %v526 = vpop.f32.mrf.mxu0
    %v527 = vpop.f32.mrf.mxu0
    %528 = vdwg.mxu0
    %529 = vst [vmem:[#allocation11] sm:$0xff] %v524
    // Predicated region
    $region58: #{tpu_custom_call.1} parent=1 // pred_check
      _
    $region59: #{tpu_custom_call.1} parent=1 // pred_check_branch
      %531 = sbr.rel (0) target = $region61
    $region60: #{tpu_custom_call.1} parent=1 // pred_region
      %s533 = ssub.s32 128, 128
      %534 = vsyncadd [#allocation4], %s533
      %s536 = sshll.u32 [#allocation11], 4
      %s537 = int_to_ptr.vmem [resolvable:$true] %s536
      %539 = dma.vmem_to_hbm [thread:$0]  %s537, 128, %s9, [#allocation4]
    $region61: #{tpu_custom_call.1} parent=1 // pred_fallthru
      _
    // Predicated region
    $region62: #{tpu_custom_call.1} parent=1 // pred_check
      _
    $region63: #{tpu_custom_call.1} parent=1 // pred_check_branch
      %541 = sbr.rel (0) target = $region65
    $region64: #{tpu_custom_call.1} parent=1 // pred_region
      %542 = dma.done [#allocation4], 128
    $region65: #{tpu_custom_call.1} parent=1 // pred_fallthru
      _
    %543 = vsyncpa [#allocation3], 1
    %544 = vsyncpa [#allocation6], 1
    %545 = vsyncpa [#allocation9], 1
    %546 = vsyncpa [#allocation4], 1

</llo_original>
